<compile_context>
chip_gen: v5e
topology: v5e:2x2
jax: 0.10.0
libtpu: 0.0.40
codegen_flags: <defaults>
</compile_context>

<pallas_src>
import numpy as np
import jax
import jax.numpy as jnp
from jax.experimental import pallas as pl
from jax.experimental.pallas import tpu as pltpu


ARRANGE = np.array(
    [28, 29, 30, 31, 0, 4, 8, 12, 24, 25, 26, 27, 1, 5, 9, 13,
     20, 21, 22, 23, 2, 6, 10, 14, 16, 17, 18, 19, 3, 7, 11, 15,
     47, 43, 39, 35, 35, 34, 33, 32, 46, 42, 38, 34, 39, 38, 37, 36,
     45, 41, 37, 33, 43, 42, 41, 40, 44, 40, 36, 32, 47, 46, 45, 44],
    dtype=np.int32)
ARRMASK = np.array(
    [1, 1, 1, 1, 1, 1, 1, 1, 1, 1, 1, 1, 1, 1, 1, 1,
     1, 1, 1, 1, 1, 1, 1, 1, 1, 1, 1, 1, 1, 1, 1, 1,
     1, 1, 1, 1, 0, 0, 0, 0, 1, 1, 1, 1, 0, 0, 0, 0,
     1, 1, 1, 1, 0, 0, 0, 0, 1, 1, 1, 1, 0, 0, 0, 0],
    dtype=np.int32)


# ---------------------------------------------------------------------------
# Fused kernel: gather+mask+im2col+conv+charge-sum (pre-folded into W0a)
#   -> Linear(72,48) -> Linear(48,16), all feature-major ("batch in lanes"),
# bf16 MXU operands with f32 accumulation, one lane-dense store per tile.
# ---------------------------------------------------------------------------
def fused_encoder_kernel(x_ref, w0_ref, b0_ref, w1_ref, b1_ref, w2_ref, b2_ref,
                         o_ref):
    x = x_ref[...]                                       # [TM, 48] f32
    xT = x.T.astype(jnp.bfloat16)                        # [48, TM] bf16 (XLU)

    # Layer 0: folded conv (72 rows) + all-ones charge-sum row (row 72).
    h = jnp.dot(w0_ref[...], xT,
                preferred_element_type=jnp.float32) + b0_ref[...]   # [73, TM]
    c = h[72:73, :]                                      # charge sum: no ReLU
    h0 = jnp.maximum(h[0:72, :], 0.0).astype(jnp.bfloat16)          # [72, TM]

    # Layer 1: Linear(72, 48) + ReLU.
    h1 = jnp.dot(w1_ref[...], h0,
                 preferred_element_type=jnp.float32) + b1_ref[...]  # [48, TM]
    h1 = jnp.maximum(h1, 0.0).astype(jnp.bfloat16)

    # Layer 2: Linear(48, 16) + ReLU.
    h2 = jnp.dot(w2_ref[...], h1,
                 preferred_element_type=jnp.float32) + b2_ref[...]  # [16, TM]
    h2 = jnp.maximum(h2, 0.0)

    # Single store: [16 + 1 (+7 zero pad to 24 aligned sublanes), TM] -> [TM, 17].
    pad = jnp.zeros((7, c.shape[1]), jnp.float32)
    outT = jnp.concatenate([h2, c, pad], axis=0)         # [24, TM]
    o_ref[...] = outT.T[:, 0:17].astype(o_ref.dtype)     # [TM, 17], one store


def _round_up(n, m):
    return ((n + m - 1) // m) * m


def _pick_tile(B, batch_tile):
    """Lane-dense (multiple-of-128) batch tile; >=2 grid steps whenever B allows
    it so dimension_semantics=("parallel",) can use both v7x TensorCores."""
    half = _round_up(max(1, (B + 1) // 2), 128)
    return int(max(128, min(batch_tile, half)))


def cae_forward(x, fused_params, *, batch_tile=2048):
    """x: [B, 48] float32 -> [B, 17] float32 (matches torch.hstack((enc, c)))."""
    B, F = x.shape
    assert F == 48, "module expects 48 input features (arrange indices 0..47)"
    w0, b0, w1, b1, w2, b2 = fused_params

    batch_tile = max(128, _round_up(int(batch_tile), 128))
    TM = _pick_tile(B, batch_tile)          # tile may overrun B; OOB rows benign
    grid = (pl.cdiv(B, TM),)
    const = lambda i: (0, 0)  # weights/biases stay VMEM-resident across steps
    # TODO(synk): pipeline_mode=pl.Buffered(1) on the constant operands would
    # shave a little VMEM / per-step bookkeeping; left at the default for
    # maximal portability across jax versions.

    flops = int(2 * B * (73 * 48 + 48 * 72 + 16 * 48))
    bytes_accessed = int(
        B * 48 * 4 + B * 17 * 4
        + sum(int(a.size) * a.dtype.itemsize for a in (w0, b0, w1, b1, w2, b2)))

    return pl.pallas_call(
        fused_encoder_kernel,
        out_shape=jax.ShapeDtypeStruct((B, 17), jnp.float32),
        grid_spec=pltpu.PrefetchScalarGridSpec(
            num_scalar_prefetch=0,
            grid=grid,
            in_specs=[
                pl.BlockSpec((TM, 48), lambda i: (i, 0)),
                pl.BlockSpec(w0.shape, const),
                pl.BlockSpec(b0.shape, const),
                pl.BlockSpec(w1.shape, const),
                pl.BlockSpec(b1.shape, const),
                pl.BlockSpec(w2.shape, const),
                pl.BlockSpec(b2.shape, const),
            ],
            out_specs=pl.BlockSpec((TM, 17), lambda i: (i, 0)),
        ),
        compiler_params=pltpu.CompilerParams(
            dimension_semantics=("parallel",)),
        cost_estimate=pl.CostEstimate(flops=flops, transcendentals=0,
                                      bytes_accessed=bytes_accessed),
    )(x, w0, b0, w1, b1, w2, b2)


# ---------------------------------------------------------------------------
# One-time parameter preprocessing (hoisted out of the forward path).
# ---------------------------------------------------------------------------
def prepare_params(params):
    """Fold gather + mask + reshape + im2col + conv into a feature-major
    W0a [73, 48] (rows 0..71 = conv outputs in torch.flatten channel-major
    order, row 72 = all-ones charge-sum row), and store the Linear weights in
    their natural [out, in] (feature-major) layout. Matmul weights are bf16;
    biases stay f32 (accumulation is f32)."""
    # Gm [48,64]: inputdata[:, k] = x[:, arrange[k]] * arrMask[k]
    gm = np.zeros((48, 64), np.float32)
    for k in range(64):
        if ARRMASK[k] == 1:
            gm[ARRANGE[k], k] = 1.0
    # P [64,81]: im2col of an 8x8 image, 3x3 kernel, stride 2 (valid) -> 3x3
    pmat = np.zeros((64, 81), np.float32)
    for oh in range(3):
        for ow in range(3):
            for kh in range(3):
                for kw in range(3):
                    src = (2 * oh + kh) * 8 + (2 * ow + kw)
                    dst = (oh * 3 + ow) * 9 + (kh * 3 + kw)
                    pmat[src, dst] = 1.0
    # Wbd [81,72]: block-diagonal conv weight producing flatten index c*9 + s
    cw = np.asarray(params["conv1_w"], np.float32).reshape(8, 9)
    wbd = np.zeros((81, 72), np.float32)
    for s in range(9):
        for ch in range(8):
            wbd[s * 9:(s + 1) * 9, ch * 9 + s] = cw[ch]

    w0 = gm @ pmat @ wbd                                           # [48, 72]
    w0a = np.concatenate([w0.T, np.ones((1, 48), np.float32)], 0)  # [73, 48]
    b0a = np.concatenate(
        [np.repeat(np.asarray(params["conv1_b"], np.float32), 9),
         np.zeros((1,), np.float32)]).reshape(73, 1)               # b0a[c*9+s]=conv_b[c]
    w1 = np.asarray(params["enc1_w"], np.float32)                  # [48, 72]
    b1 = np.asarray(params["enc1_b"], np.float32).reshape(48, 1)
    w2 = np.asarray(params["enc2_w"], np.float32)                  # [16, 48]
    b2 = np.asarray(params["enc2_b"], np.float32).reshape(16, 1)

    return (jnp.asarray(w0a, jnp.bfloat16), jnp.asarray(b0a, jnp.float32),
            jnp.asarray(w1, jnp.bfloat16), jnp.asarray(b1, jnp.float32),
            jnp.asarray(w2, jnp.bfloat16), jnp.asarray(b2, jnp.float32))


def init_params(key, latent_dims=4):
    """Deterministic synthetic init, U(-1/sqrt(fan_in), 1/sqrt(fan_in))."""
    del latent_dims  # linear_mean/linear_sig are never used in forward
    ks = jax.random.split(key, 6)

    def u(k, shape, fan_in):
        bound = 1.0 / np.sqrt(float(fan_in))
        return jax.random.uniform(k, shape, jnp.float32, -bound, bound)

    return {
        "conv1_w": u(ks[0], (8, 1, 3, 3), 9),
        "conv1_b": u(ks[1], (8,), 9),
        "enc1_w": u(ks[2], (48, 72), 72),
        "enc1_b": u(ks[3], (48,), 72),
        "enc2_w": u(ks[4], (16, 48), 48),
        "enc2_b": u(ks[5], (16,), 48),
    }


def reference_forward(x, params):
    """Pure-JAX transcription of the PyTorch forward (for validation, f32)."""
    B = x.shape[0]
    c = jnp.sum(x[:, 0:48], axis=1, keepdims=True)
    d = x[:, ARRANGE] * jnp.asarray(ARRMASK, jnp.float32)[None, :]
    img = d.reshape(B, 1, 8, 8)
    h = jax.lax.conv_general_dilated(
        img, params["conv1_w"], window_strides=(2, 2), padding="VALID",
        dimension_numbers=("NCHW", "OIHW", "NCHW"))
    h = jnp.maximum(h + params["conv1_b"][None, :, None, None], 0.0)
    h = h.reshape(B, -1)                                       # torch.flatten order
    h = jnp.maximum(h @ params["enc1_w"].T + params["enc1_b"], 0.0)
    h = jnp.maximum(h @ params["enc2_w"].T + params["enc2_b"], 0.0)
    return jnp.concatenate([h, c], axis=1)


if __name__ == "__main__":
    key = jax.random.PRNGKey(0)
    k_x, k_p, k_x2 = jax.random.split(key, 3)

    # Small deterministic example: B=2 events of 48 trigger-cell charges.
    B = 2
    x = jax.random.normal(k_x, (B, 48), jnp.float32)
    params = init_params(k_p, latent_dims=4)
    fused = prepare_params(params)   # hoisted weight preprocessing (done once)

    out = jax.block_until_ready(cae_forward(x, fused))
    assert out.shape == (B, 17)
    ref = reference_forward(x, params)
    # bf16 matmul operands (f32 accumulation) -> loosened tolerance.
    assert jnp.allclose(out, ref, atol=7.5e-2, rtol=2e-2), "mismatch vs reference"

    # Exercise the multi-step grid path (2 tiles, ragged last tile).
    B2 = 1000
    x2 = jax.random.normal(k_x2, (B2, 48), jnp.float32)
    out2 = jax.block_until_ready(cae_forward(x2, fused))
    ref2 = reference_forward(x2, params)
    assert out2.shape == (B2, 17)
    assert jnp.allclose(out2, ref2, atol=7.5e-2, rtol=2e-2), "mismatch (tiled)"

    print("KERNEL_OK")
</pallas_src>

<mosaic_0001>
module attributes {stable_mosaic.version = 11 : i64} {
  func.func @fused_encoder_kernel(%arg0: i32, %arg1: memref<128x48xf32, #tpu.memory_space<vmem>>, %arg2: memref<73x48xbf16, #tpu.memory_space<vmem>>, %arg3: memref<73x1xf32, #tpu.memory_space<vmem>>, %arg4: memref<48x72xbf16, #tpu.memory_space<vmem>>, %arg5: memref<48x1xf32, #tpu.memory_space<vmem>>, %arg6: memref<16x48xbf16, #tpu.memory_space<vmem>>, %arg7: memref<16x1xf32, #tpu.memory_space<vmem>>, %arg8: memref<128x17xf32, #tpu.memory_space<vmem>>) attributes {dimension_semantics = [#tpu.dimension_semantics<parallel>], iteration_bounds = array<i64: 1>, scalar_prefetch = 0 : i64, scratch_operands = 0 : i64, tpu.core_type = #tpu.core_type<tc>, window_params = [{transform_indices = @transform_0, window_bounds = array<i64: 128, 48>}, {pipeline_mode = #tpu.pipeline_mode<synchronous>, transform_indices = @transform_1, window_bounds = array<i64: 73, 48>}, {pipeline_mode = #tpu.pipeline_mode<synchronous>, transform_indices = @transform_2, window_bounds = array<i64: 73, 1>}, {pipeline_mode = #tpu.pipeline_mode<synchronous>, transform_indices = @transform_3, window_bounds = array<i64: 48, 72>}, {pipeline_mode = #tpu.pipeline_mode<synchronous>, transform_indices = @transform_4, window_bounds = array<i64: 48, 1>}, {pipeline_mode = #tpu.pipeline_mode<synchronous>, transform_indices = @transform_5, window_bounds = array<i64: 16, 48>}, {pipeline_mode = #tpu.pipeline_mode<synchronous>, transform_indices = @transform_6, window_bounds = array<i64: 16, 1>}, {transform_indices = @transform_7, window_bounds = array<i64: 128, 17>}]} {
    %c0 = arith.constant 0 : index
    %c0_0 = arith.constant 0 : index
    %0 = vector.load %arg1[%c0, %c0_0] : memref<128x48xf32, #tpu.memory_space<vmem>>, vector<128x48xf32>
    %1 = tpu.transpose %0, [1, 0] : vector<128x48xf32> -> vector<48x128xf32>
    %2 = arith.truncf %1 : vector<48x128xf32> to vector<48x128xbf16>
    %c0_1 = arith.constant 0 : index
    %c0_2 = arith.constant 0 : index
    %3 = vector.load %arg2[%c0_1, %c0_2] : memref<73x48xbf16, #tpu.memory_space<vmem>>, vector<73x48xbf16>
    %cst = arith.constant dense<0.000000e+00> : vector<73x128xf32>
    %4 = tpu.matmul %3, %2, %cst {dimension_numbers = #tpu.dot_dimension_numbers<[1], [0], [0], [1], [0, 0, 1, 1], [], []>} : vector<73x48xbf16>, vector<48x128xbf16>, vector<73x128xf32> -> vector<73x128xf32>
    %c0_3 = arith.constant 0 : index
    %c0_4 = arith.constant 0 : index
    %5 = vector.load %arg3[%c0_3, %c0_4] : memref<73x1xf32, #tpu.memory_space<vmem>>, vector<73x1xf32>
    %6 = vector.broadcast %5 : vector<73x1xf32> to vector<73x128xf32>
    %7 = arith.addf %4, %6 : vector<73x128xf32>
    %8 = vector.extract_strided_slice %7 {offsets = [72, 0], sizes = [1, 128], strides = [1, 1]} : vector<73x128xf32> to vector<1x128xf32>
    %9 = vector.extract_strided_slice %7 {offsets = [0, 0], sizes = [72, 128], strides = [1, 1]} : vector<73x128xf32> to vector<72x128xf32>
    %cst_5 = arith.constant 0.000000e+00 : f32
    %10 = vector.broadcast %cst_5 : f32 to vector<72x128xf32>
    %11 = arith.maximumf %9, %10 : vector<72x128xf32>
    %12 = arith.truncf %11 : vector<72x128xf32> to vector<72x128xbf16>
    %c0_6 = arith.constant 0 : index
    %c0_7 = arith.constant 0 : index
    %13 = vector.load %arg4[%c0_6, %c0_7] : memref<48x72xbf16, #tpu.memory_space<vmem>>, vector<48x72xbf16>
    %cst_8 = arith.constant dense<0.000000e+00> : vector<48x128xf32>
    %14 = tpu.matmul %13, %12, %cst_8 {dimension_numbers = #tpu.dot_dimension_numbers<[1], [0], [0], [1], [0, 0, 1, 1], [], []>} : vector<48x72xbf16>, vector<72x128xbf16>, vector<48x128xf32> -> vector<48x128xf32>
    %c0_9 = arith.constant 0 : index
    %c0_10 = arith.constant 0 : index
    %15 = vector.load %arg5[%c0_9, %c0_10] : memref<48x1xf32, #tpu.memory_space<vmem>>, vector<48x1xf32>
    %16 = vector.broadcast %15 : vector<48x1xf32> to vector<48x128xf32>
    %17 = arith.addf %14, %16 : vector<48x128xf32>
    %cst_11 = arith.constant 0.000000e+00 : f32
    %18 = vector.broadcast %cst_11 : f32 to vector<48x128xf32>
    %19 = arith.maximumf %17, %18 : vector<48x128xf32>
    %20 = arith.truncf %19 : vector<48x128xf32> to vector<48x128xbf16>
    %c0_12 = arith.constant 0 : index
    %c0_13 = arith.constant 0 : index
    %21 = vector.load %arg6[%c0_12, %c0_13] : memref<16x48xbf16, #tpu.memory_space<vmem>>, vector<16x48xbf16>
    %cst_14 = arith.constant dense<0.000000e+00> : vector<16x128xf32>
    %22 = tpu.matmul %21, %20, %cst_14 {dimension_numbers = #tpu.dot_dimension_numbers<[1], [0], [0], [1], [0, 0, 1, 1], [], []>} : vector<16x48xbf16>, vector<48x128xbf16>, vector<16x128xf32> -> vector<16x128xf32>
    %c0_15 = arith.constant 0 : index
    %c0_16 = arith.constant 0 : index
    %23 = vector.load %arg7[%c0_15, %c0_16] : memref<16x1xf32, #tpu.memory_space<vmem>>, vector<16x1xf32>
    %24 = vector.broadcast %23 : vector<16x1xf32> to vector<16x128xf32>
    %25 = arith.addf %22, %24 : vector<16x128xf32>
    %cst_17 = arith.constant 0.000000e+00 : f32
    %26 = vector.broadcast %cst_17 : f32 to vector<16x128xf32>
    %27 = arith.maximumf %25, %26 : vector<16x128xf32>
    %cst_18 = arith.constant 0.000000e+00 : f32
    %28 = vector.broadcast %cst_18 : f32 to vector<7x128xf32>
    %29 = tpu.concatenate %27, %8, %28 in 0 : vector<16x128xf32>, vector<1x128xf32>, vector<7x128xf32> -> vector<24x128xf32>
    %30 = tpu.transpose %29, [1, 0] : vector<24x128xf32> -> vector<128x24xf32>
    %31 = vector.extract_strided_slice %30 {offsets = [0, 0], sizes = [128, 17], strides = [1, 1]} : vector<128x24xf32> to vector<128x17xf32>
    %c0_19 = arith.constant 0 : index
    %c0_20 = arith.constant 0 : index
    %32 = vector.load %arg8[%c0_19, %c0_20] : memref<128x17xf32, #tpu.memory_space<vmem>>, vector<128x17xf32>
    tpu.vector_store %arg8[%c0_19, %c0_20], %31 {strides = array<i32>} : memref<128x17xf32, #tpu.memory_space<vmem>>, vector<128x17xf32>,
    return
  }
  func.func @transform_0(%arg0: i32) -> (i32, i32) {
    %c0_i32 = arith.constant 0 : i32
    %c0_i32_0 = arith.constant 0 : i32
    return %arg0, %c0_i32 : i32, i32
  }
  func.func @transform_1(%arg0: i32) -> (i32, i32) {
    %c0_i32 = arith.constant 0 : i32
    %c0_i32_0 = arith.constant 0 : i32
    %c0_i32_1 = arith.constant 0 : i32
    return %c0_i32, %c0_i32_0 : i32, i32
  }
  func.func @transform_2(%arg0: i32) -> (i32, i32) {
    %c0_i32 = arith.constant 0 : i32
    %c0_i32_0 = arith.constant 0 : i32
    %c0_i32_1 = arith.constant 0 : i32
    return %c0_i32, %c0_i32_0 : i32, i32
  }
  func.func @transform_3(%arg0: i32) -> (i32, i32) {
    %c0_i32 = arith.constant 0 : i32
    %c0_i32_0 = arith.constant 0 : i32
    %c0_i32_1 = arith.constant 0 : i32
    return %c0_i32, %c0_i32_0 : i32, i32
  }
  func.func @transform_4(%arg0: i32) -> (i32, i32) {
    %c0_i32 = arith.constant 0 : i32
    %c0_i32_0 = arith.constant 0 : i32
    %c0_i32_1 = arith.constant 0 : i32
    return %c0_i32, %c0_i32_0 : i32, i32
  }
  func.func @transform_5(%arg0: i32) -> (i32, i32) {
    %c0_i32 = arith.constant 0 : i32
    %c0_i32_0 = arith.constant 0 : i32
    %c0_i32_1 = arith.constant 0 : i32
    return %c0_i32, %c0_i32_0 : i32, i32
  }
  func.func @transform_6(%arg0: i32) -> (i32, i32) {
    %c0_i32 = arith.constant 0 : i32
    %c0_i32_0 = arith.constant 0 : i32
    %c0_i32_1 = arith.constant 0 : i32
    return %c0_i32, %c0_i32_0 : i32, i32
  }
  func.func @transform_7(%arg0: i32) -> (i32, i32) {
    %c0_i32 = arith.constant 0 : i32
    %c0_i32_0 = arith.constant 0 : i32
    return %arg0, %c0_i32 : i32, i32
  }
}

</mosaic_0001>

<llo_original>
// kernel: tpu_custom_call.1
$region0: #{tpu_custom_call.1}
  #allocation0 [shape = 'u32[]', space=smem, size = 0x4, offset = 0x4, fixed_abs, tag = 'smem constant byte address 0x4 - core index']
  #allocation1 [shape = 'u32[72,128]{1,0:T(1,128)}', space=vmem, size = 0x9000, scoped, tag = 'internal scratch']
  %s0 = inlined_call_operand.vmem [shape: f32[2,48], index: 0, kind: input, shape index: {}]
  %s1 = inlined_call_operand.vmem [shape: bf16[73,48], index: 1, kind: input, shape index: {}]
  %s2 = inlined_call_operand.vmem [shape: f32[73,1], index: 2, kind: input, shape index: {}]
  %s3 = inlined_call_operand.vmem [shape: bf16[48,72], index: 3, kind: input, shape index: {}]
  %s4 = inlined_call_operand.vmem [shape: f32[48,1], index: 4, kind: input, shape index: {}]
  %s5 = inlined_call_operand.vmem [shape: bf16[16,48], index: 5, kind: input, shape index: {}]
  %s6 = inlined_call_operand.vmem [shape: f32[16,1], index: 6, kind: input, shape index: {}]
  %s7 = inlined_call_operand.hbm [shape: f32[2,17], index: 7, kind: output, shape index: {}]
  %s8 = sld [smem:[#allocation0]]
  $region38: #{tpu_custom_call.1} parent=0
    _
  %s10 = ssub.s32 1, %s8
  %s11 = scalar_select 0, %s10, %s8
  $region1: #{tpu_custom_call.1} parent=0
    #allocation2 [shape = 'u8[65536]{0}', space=vmem, size = 0x10000, scoped, tag = 'output window, operand 0, single buffered']
    #allocation3 [shape = 's32[1]{0}', space=sflag, size = 0x4, scoped, tag = 'scoped memory for tpu_custom_call.1']
    %12 = vsyncpa [#allocation3], 0
    // Predicated region
    $region2: #{tpu_custom_call.1} parent=1 // pred_check
      _
    $region3: #{tpu_custom_call.1} parent=1 // pred_check_branch
      %14 = sbr.rel (0) target = $region5
    $region4: #{tpu_custom_call.1} parent=1 // pred_region
      _
    $region5: #{tpu_custom_call.1} parent=1 // pred_fallthru
      _
    // Predicated region
    $region6: #{tpu_custom_call.1} parent=1 // pred_check
      _
    $region7: #{tpu_custom_call.1} parent=1 // pred_check_branch
      %16 = sbr.rel (0) target = $region9
    $region8: #{tpu_custom_call.1} parent=1 // pred_region
      _
    $region9: #{tpu_custom_call.1} parent=1 // pred_fallthru
      _
    // Predicated region
    $region10: #{tpu_custom_call.1} parent=1 // pred_check
      _
    $region11: #{tpu_custom_call.1} parent=1 // pred_check_branch
      %18 = sbr.rel (0) target = $region13
    $region12: #{tpu_custom_call.1} parent=1 // pred_region
      _
    $region13: #{tpu_custom_call.1} parent=1 // pred_fallthru
      _
    // Predicated region
    $region14: #{tpu_custom_call.1} parent=1 // pred_check
      _
    $region15: #{tpu_custom_call.1} parent=1 // pred_check_branch
      %20 = sbr.rel (0) target = $region17
    $region16: #{tpu_custom_call.1} parent=1 // pred_region
      _
    $region17: #{tpu_custom_call.1} parent=1 // pred_fallthru
      _
    // Predicated region
    $region18: #{tpu_custom_call.1} parent=1 // pred_check
      _
    $region19: #{tpu_custom_call.1} parent=1 // pred_check_branch
      %22 = sbr.rel (0) target = $region21
    $region20: #{tpu_custom_call.1} parent=1 // pred_region
      _
    $region21: #{tpu_custom_call.1} parent=1 // pred_fallthru
      _
    // Predicated region
    $region22: #{tpu_custom_call.1} parent=1 // pred_check
      _
    $region23: #{tpu_custom_call.1} parent=1 // pred_check_branch
      %24 = sbr.rel (0) target = $region25
    $region24: #{tpu_custom_call.1} parent=1 // pred_region
      _
    $region25: #{tpu_custom_call.1} parent=1 // pred_fallthru
      _
    // Predicated region
    $region26: #{tpu_custom_call.1} parent=1 // pred_check
      _
    $region27: #{tpu_custom_call.1} parent=1 // pred_check_branch
      %26 = sbr.rel (0) target = $region29
    $region28: #{tpu_custom_call.1} parent=1 // pred_region
      _
    $region29: #{tpu_custom_call.1} parent=1 // pred_fallthru
      _
    %v28 = vld [vmem:[%s0] sm:$0xff]
    %v29 = vld [vmem:[%s0 + $0x8] sm:$0xff]
    %v30 = vld [vmem:[%s0 + $0x10] sm:$0xff]
    %v31 = vld [vmem:[%s0 + $0x18] sm:$0xff]
    %v32 = vld [vmem:[%s0 + $0x20] sm:$0xff]
    %v33 = vld [vmem:[%s0 + $0x28] sm:$0xff]
    %v34 = vld [vmem:[%s0 + $0x30] sm:$0xff]
    %v35 = vld [vmem:[%s0 + $0x38] sm:$0xff]
    %v36 = vld [vmem:[%s0 + $0x40] sm:$0xff]
    %v37 = vld [vmem:[%s0 + $0x48] sm:$0xff]
    %v38 = vld [vmem:[%s0 + $0x50] sm:$0xff]
    %v39 = vld [vmem:[%s0 + $0x58] sm:$0xff]
    %v40 = vld [vmem:[%s0 + $0x60] sm:$0xff]
    %v41 = vld [vmem:[%s0 + $0x68] sm:$0xff]
    %v42 = vld [vmem:[%s0 + $0x70] sm:$0xff]
    %v43 = vld [vmem:[%s0 + $0x78] sm:$0xff]
    %44 = vxpose.xlu0.b32.start [1/16] %v28, 128
    %45 = vxpose.xlu0.b32.cont [2/16] %v29, 128
    %46 = vxpose.xlu0.b32.cont [3/16] %v30, 128
    %47 = vxpose.xlu0.b32.cont [4/16] %v31, 128
    %48 = vxpose.xlu0.b32.cont [5/16] %v32, 128
    %49 = vxpose.xlu0.b32.cont [6/16] %v33, 128
    %50 = vxpose.xlu0.b32.cont [7/16] %v34, 128
    %51 = vxpose.xlu0.b32.cont [8/16] %v35, 128
    %52 = vxpose.xlu0.b32.cont [9/16] %v36, 128
    %53 = vxpose.xlu0.b32.cont [10/16] %v37, 128
    %54 = vxpose.xlu0.b32.cont [11/16] %v38, 128
    %55 = vxpose.xlu0.b32.cont [12/16] %v39, 128
    %56 = vxpose.xlu0.b32.cont [13/16] %v40, 128
    %57 = vxpose.xlu0.b32.cont [14/16] %v41, 128
    %58 = vxpose.xlu0.b32.cont [15/16] %v42, 128
    %59 = vxpose.xlu0.b32.end [16/16] %v43, 128
    %v60 = vpop.trf.xlu0
    %v61 = vpop.trf.xlu0
    %v62 = vpop.trf.xlu0
    %v63 = vpop.trf.xlu0
    %v64 = vpop.trf.xlu0
    %v65 = vpop.trf.xlu0
    %v66 = vpop.trf.xlu0
    %v67 = vpop.trf.xlu0
    %v68 = vpop.trf.xlu0
    %v69 = vpop.trf.xlu0
    %v70 = vpop.trf.xlu0
    %v71 = vpop.trf.xlu0
    %v72 = vpop.trf.xlu0
    %v73 = vpop.trf.xlu0
    %v74 = vpop.trf.xlu0
    %v75 = vpop.trf.xlu0
    %v76 = vpack.c.bf16 %v61, %v60
    %v77 = vpack.c.bf16 %v63, %v62
    %v78 = vpack.c.bf16 %v65, %v64
    %v79 = vld [vmem:[%s1] sm:$0xf]
    %v80 = vld [vmem:[%s1 + $0x4] sm:$0xf]
    %v81 = vld [vmem:[%s1 + $0x8] sm:$0xf]
    %v82 = vld [vmem:[%s1 + $0xc] sm:$0xf]
    %v83 = vld [vmem:[%s1 + $0x10] sm:$0xf]
    %v84 = vld [vmem:[%s1 + $0x14] sm:$0xf]
    %v85 = vld [vmem:[%s1 + $0x18] sm:$0xf]
    %v86 = vld [vmem:[%s1 + $0x1c] sm:$0xf]
    %v87 = vld [vmem:[%s1 + $0x20] sm:$0xf]
    %v88 = vld [vmem:[%s1 + $0x24] sm:$0x1]
    %v89 = vld [vmem:[%s2] sm:$0xff]
    %v90 = vld [vmem:[%s2 + $0x8] sm:$0xff]
    %v91 = vld [vmem:[%s2 + $0x10] sm:$0xff]
    %v92 = vld [vmem:[%s2 + $0x18] sm:$0xff]
    %v93 = vld [vmem:[%s2 + $0x20] sm:$0xff]
    %v94 = vld [vmem:[%s2 + $0x28] sm:$0xff]
    %v95 = vld [vmem:[%s2 + $0x30] sm:$0xff]
    %v96 = vld [vmem:[%s2 + $0x38] sm:$0xff]
    %v97 = vld [vmem:[%s2 + $0x40] sm:$0xff]
    %v98 = vld [vmem:[%s2 + $0x48] sm:$0x1]
    %100 = vset.pattern.permute.xlu0 0
    %101 = vperm.xlu0 %100, %v89
    %v102 = vpop.permute.xlu0 %101
    %105 = vset.pattern.permute.xlu0 0
    %106 = vperm.xlu0 %105, %v90
    %v107 = vpop.permute.xlu0 %106
    %110 = vset.pattern.permute.xlu0 0
    %111 = vperm.xlu0 %110, %v91
    %v112 = vpop.permute.xlu0 %111
    %115 = vset.pattern.permute.xlu0 0
    %116 = vperm.xlu0 %115, %v92
    %v117 = vpop.permute.xlu0 %116
    %120 = vset.pattern.permute.xlu0 0
    %121 = vperm.xlu0 %120, %v93
    %v122 = vpop.permute.xlu0 %121
    %125 = vset.pattern.permute.xlu0 0
    %126 = vperm.xlu0 %125, %v94
    %v127 = vpop.permute.xlu0 %126
    %130 = vset.pattern.permute.xlu0 0
    %131 = vperm.xlu0 %130, %v95
    %v132 = vpop.permute.xlu0 %131
    %135 = vset.pattern.permute.xlu0 0
    %136 = vperm.xlu0 %135, %v96
    %v137 = vpop.permute.xlu0 %136
    %140 = vset.pattern.permute.xlu0 0
    %141 = vperm.xlu0 %140, %v97
    %v142 = vpop.permute.xlu0 %141
    %145 = vset.pattern.permute.xlu0 0
    %146 = vperm.xlu0 %145, %v98
    %v147 = vpop.permute.xlu0 %146
    %v159 = vunpack.c.l.b16 %v79
    %v160 = vunpack.c.l.b16 %v80
    %v161 = vunpack.c.l.b16 %v81
    %v162 = vunpack.c.l.b16 %v82
    %v163 = vunpack.c.l.b16 %v83
    %v164 = vunpack.c.l.b16 %v84
    %v165 = vunpack.c.l.b16 %v85
    %v166 = vunpack.c.l.b16 %v86
    %v167 = vunpack.c.l.b16 %v87
    %v168 = vunpack.c.l.b16 %v88
    %v169 = vpack.c.b16 %v160, %v159
    %v170 = vpack.c.b16 %v162, %v161
    %v171 = vpack.c.b16 %v164, %v163
    %v172 = vpack.c.b16 %v166, %v165
    %v173 = vpack.c.b16 %v168, %v167
    %vm174 = vcmask 392192
    %v176 = vsel %vm174, %v169, 0
    %v179 = vsel %vm174, %v170, 0
    %v182 = vsel %vm174, %v171, 0
    %v185 = vsel %vm174, %v172, 0
    %v188 = vsel %vm174, %v173, 0
    %190 = vmatpush.bf16.msra.mxu0 0
    %191 = vmatpush.bf16.msra.mxu0 0
    %192 = vmatpush.bf16.msra.mxu0 0
    %193 = vmatpush.bf16.msra.mxu0 0
    %194 = vmatpush.bf16.msra.mxu0 0
    %195 = vmatpush.bf16.msra.mxu0 %v78
    %196 = vmatpush.bf16.msra.mxu0 %v77
    %197 = vmatpush.bf16.msra.mxu0 %v76
    %198 = vmatmul.bf16.gmra.mxu0 %v176
    %v199 = vpop.f32.mrf.mxu0
    %v200 = vadd.f32 %v102, %v199
    %v201 = vpop.f32.mrf.mxu0
    %v202 = vadd.f32 %v107, %v201
    %203 = vmatmul.bf16.gmra.mxu0 %v179
    %v204 = vpop.f32.mrf.mxu0
    %v205 = vadd.f32 %v112, %v204
    %v206 = vpop.f32.mrf.mxu0
    %v207 = vadd.f32 %v117, %v206
    %208 = vmatmul.bf16.gmra.mxu0 %v182
    %v209 = vpop.f32.mrf.mxu0
    %v210 = vadd.f32 %v122, %v209
    %v211 = vpop.f32.mrf.mxu0
    %v212 = vadd.f32 %v127, %v211
    %213 = vmatmul.bf16.gmra.mxu0 %v185
    %v214 = vpop.f32.mrf.mxu0
    %v215 = vadd.f32 %v132, %v214
    %v216 = vpop.f32.mrf.mxu0
    %v217 = vadd.f32 %v137, %v216
    %218 = vmatmul.bf16.gmra.mxu0 %v188
    %v219 = vpop.f32.mrf.mxu0
    %v220 = vadd.f32 %v142, %v219
    %v221 = vpop.f32.mrf.mxu0
    %v222 = vadd.f32 %v147, %v221
    %223 = vdwg.mxu0
    %v224 = vmax.f32 %v200, 0.0
    %v225 = vmax.f32 %v202, 0.0
    %v226 = vmax.f32 %v205, 0.0
    %v227 = vmax.f32 %v207, 0.0
    %v228 = vmax.f32 %v210, 0.0
    %v229 = vmax.f32 %v212, 0.0
    %v230 = vmax.f32 %v215, 0.0
    %v231 = vmax.f32 %v217, 0.0
    %v232 = vmax.f32 %v220, 0.0
    %v233 = vpack.c.bf16 %v225, %v224
    %v234 = vpack.c.bf16 %v227, %v226
    %v235 = vpack.c.bf16 %v229, %v228
    %v236 = vpack.c.bf16 %v231, %v230
    %v237 = vpack.c.bf16 %v232, %v232
    %v238 = vld [vmem:[%s3] sm:$0xf]
    %v239 = vld [vmem:[%s3 + $0x4] sm:$0xf]
    %v240 = vld [vmem:[%s3 + $0x8] sm:$0xf]
    %v241 = vld [vmem:[%s3 + $0xc] sm:$0xf]
    %v242 = vld [vmem:[%s3 + $0x10] sm:$0xf]
    %v243 = vld [vmem:[%s3 + $0x14] sm:$0xf]
    %v244 = vld [vmem:[%s4] sm:$0xff]
    %v245 = vld [vmem:[%s4 + $0x8] sm:$0xff]
    %v246 = vld [vmem:[%s4 + $0x10] sm:$0xff]
    %v247 = vld [vmem:[%s4 + $0x18] sm:$0xff]
    %v248 = vld [vmem:[%s4 + $0x20] sm:$0xff]
    %v249 = vld [vmem:[%s4 + $0x28] sm:$0xff]
    %251 = vset.pattern.permute.xlu0 0
    %252 = vperm.xlu0 %251, %v244
    %v253 = vpop.permute.xlu0 %252
    %256 = vset.pattern.permute.xlu0 0
    %257 = vperm.xlu0 %256, %v245
    %v258 = vpop.permute.xlu0 %257
    %261 = vset.pattern.permute.xlu0 0
    %262 = vperm.xlu0 %261, %v246
    %v263 = vpop.permute.xlu0 %262
    %266 = vset.pattern.permute.xlu0 0
    %267 = vperm.xlu0 %266, %v247
    %v268 = vpop.permute.xlu0 %267
    %271 = vset.pattern.permute.xlu0 0
    %272 = vperm.xlu0 %271, %v248
    %v273 = vpop.permute.xlu0 %272
    %276 = vset.pattern.permute.xlu0 0
    %277 = vperm.xlu0 %276, %v249
    %v278 = vpop.permute.xlu0 %277
    %v286 = vunpack.c.l.b16 %v238
    %v287 = vunpack.c.l.b16 %v239
    %v288 = vunpack.c.l.b16 %v240
    %v289 = vunpack.c.l.b16 %v241
    %v290 = vunpack.c.l.b16 %v242
    %v291 = vunpack.c.l.b16 %v243
    %v292 = vpack.c.b16 %v287, %v286
    %v293 = vpack.c.b16 %v289, %v288
    %v294 = vpack.c.b16 %v291, %v290
    %vm295 = vcmask 588800
    %v297 = vsel %vm295, %v292, 0
    %v300 = vsel %vm295, %v293, 0
    %v303 = vsel %vm295, %v294, 0
    %vm305 = vcmask 1043456
    %v307 = vsel %vm305, %v237, 0
    %309 = vmatpush.bf16.msra.mxu0 0
    %310 = vmatpush.bf16.msra.mxu0 0
    %311 = vmatpush.bf16.msra.mxu0 0
    %312 = vmatpush.bf16.msra.mxu0 %v307
    %313 = vmatpush.bf16.msra.mxu0 %v236
    %314 = vmatpush.bf16.msra.mxu0 %v235
    %315 = vmatpush.bf16.msra.mxu0 %v234
    %316 = vmatpush.bf16.msra.mxu0 %v233
    %317 = vmatmul.bf16.gmra.mxu0 %v297
    %v318 = vpop.f32.mrf.mxu0
    %v319 = vadd.f32 %v253, %v318
    %v320 = vpop.f32.mrf.mxu0
    %v321 = vadd.f32 %v258, %v320
    %322 = vmatmul.bf16.gmra.mxu0 %v300
    %v323 = vpop.f32.mrf.mxu0
    %v324 = vadd.f32 %v263, %v323
    %v325 = vpop.f32.mrf.mxu0
    %v326 = vadd.f32 %v268, %v325
    %327 = vmatmul.bf16.gmra.mxu0 %v303
    %v328 = vpop.f32.mrf.mxu0
    %v329 = vadd.f32 %v273, %v328
    %v330 = vpop.f32.mrf.mxu0
    %v331 = vadd.f32 %v278, %v330
    %332 = vdwg.mxu0
    %v333 = vmax.f32 %v319, 0.0
    %v334 = vmax.f32 %v321, 0.0
    %v335 = vmax.f32 %v324, 0.0
    %v336 = vmax.f32 %v326, 0.0
    %v337 = vmax.f32 %v329, 0.0
    %v338 = vmax.f32 %v331, 0.0
    %v339 = vpack.c.bf16 %v334, %v333
    %v340 = vpack.c.bf16 %v336, %v335
    %v341 = vpack.c.bf16 %v338, %v337
    %v342 = vld [vmem:[%s5] sm:$0xf]
    %v343 = vld [vmem:[%s5 + $0x4] sm:$0xf]
    %v344 = vld [vmem:[%s6] sm:$0xff]
    %v345 = vld [vmem:[%s6 + $0x8] sm:$0xff]
    %347 = vset.pattern.permute.xlu0 0
    %348 = vperm.xlu0 %347, %v344
    %v349 = vpop.permute.xlu0 %348
    %352 = vset.pattern.permute.xlu0 0
    %353 = vperm.xlu0 %352, %v345
    %v354 = vpop.permute.xlu0 %353
    %v358 = vunpack.c.l.b16 %v342
    %v359 = vunpack.c.l.b16 %v343
    %v360 = vpack.c.b16 %v359, %v358
    %v362 = vsel %vm174, %v360, 0
    %364 = vmatpush.bf16.msra.mxu0 0
    %365 = vmatpush.bf16.msra.mxu0 0
    %366 = vmatpush.bf16.msra.mxu0 0
    %367 = vmatpush.bf16.msra.mxu0 0
    %368 = vmatpush.bf16.msra.mxu0 0
    %369 = vmatpush.bf16.msra.mxu0 %v341
    %370 = vmatpush.bf16.msra.mxu0 %v340
    %371 = vmatpush.bf16.msra.mxu0 %v339
    %372 = vmatmul.bf16.gmra.mxu0 %v362
    %v373 = vpop.f32.mrf.mxu0
    %v374 = vadd.f32 %v349, %v373
    %v375 = vpop.f32.mrf.mxu0
    %v376 = vadd.f32 %v354, %v375
    %377 = vdwg.mxu0
    %v378 = vmax.f32 %v374, 0.0
    %v379 = vmax.f32 %v376, 0.0
    %vm380 = vcmask 1040384
    %v381 = vsel %vm380, %v222, 0.0
    %382 = vxpose.xlu0.b32.start [1/16] %v378, 128
    %383 = vxpose.xlu0.b32.cont [2/16] %v379, 128
    %384 = vxpose.xlu0.b32.cont [3/16] %v381, 128
    %385 = vxpose.xlu0.b32.cont [4/16] 0.0, 128
    %386 = vxpose.xlu0.b32.cont [5/16] 0.0, 128
    %387 = vxpose.xlu0.b32.cont [6/16] 0.0, 128
    %388 = vxpose.xlu0.b32.cont [7/16] 0.0, 128
    %389 = vxpose.xlu0.b32.cont [8/16] 0.0, 128
    %390 = vxpose.xlu0.b32.cont [9/16] 0.0, 128
    %391 = vxpose.xlu0.b32.cont [10/16] 0.0, 128
    %392 = vxpose.xlu0.b32.cont [11/16] 0.0, 128
    %393 = vxpose.xlu0.b32.cont [12/16] 0.0, 128
    %394 = vxpose.xlu0.b32.cont [13/16] 0.0, 128
    %395 = vxpose.xlu0.b32.cont [14/16] 0.0, 128
    %396 = vxpose.xlu0.b32.cont [15/16] 0.0, 128
    %397 = vxpose.xlu0.b32.end [16/16] 0.0, 128
    %v398 = vpop.trf.xlu0
    %v399 = vpop.trf.xlu0
    %v400 = vpop.trf.xlu0
    %v401 = vpop.trf.xlu0
    %v402 = vpop.trf.xlu0
    %v403 = vpop.trf.xlu0
    %v404 = vpop.trf.xlu0
    %v405 = vpop.trf.xlu0
    %v406 = vpop.trf.xlu0
    %v407 = vpop.trf.xlu0
    %v408 = vpop.trf.xlu0
    %v409 = vpop.trf.xlu0
    %v410 = vpop.trf.xlu0
    %v411 = vpop.trf.xlu0
    %v412 = vpop.trf.xlu0
    %v413 = vpop.trf.xlu0
    %vm414 = vcmask 138240
    %415 = vst.msk [vmem:[#allocation2] sm:$0xff] %vm414, %v398
    %416 = vst.msk [vmem:[#allocation2 + $0x8] sm:$0xff] %vm414, %v399
    %417 = vst.msk [vmem:[#allocation2 + $0x10] sm:$0xff] %vm414, %v400
    %418 = vst.msk [vmem:[#allocation2 + $0x18] sm:$0xff] %vm414, %v401
    %419 = vst.msk [vmem:[#allocation2 + $0x20] sm:$0xff] %vm414, %v402
    %420 = vst.msk [vmem:[#allocation2 + $0x28] sm:$0xff] %vm414, %v403
    %421 = vst.msk [vmem:[#allocation2 + $0x30] sm:$0xff] %vm414, %v404
    %422 = vst.msk [vmem:[#allocation2 + $0x38] sm:$0xff] %vm414, %v405
    %423 = vst.msk [vmem:[#allocation2 + $0x40] sm:$0xff] %vm414, %v406
    %424 = vst.msk [vmem:[#allocation2 + $0x48] sm:$0xff] %vm414, %v407
    %425 = vst.msk [vmem:[#allocation2 + $0x50] sm:$0xff] %vm414, %v408
    %426 = vst.msk [vmem:[#allocation2 + $0x58] sm:$0xff] %vm414, %v409
    %427 = vst.msk [vmem:[#allocation2 + $0x60] sm:$0xff] %vm414, %v410
    %428 = vst.msk [vmem:[#allocation2 + $0x68] sm:$0xff] %vm414, %v411
    %429 = vst.msk [vmem:[#allocation2 + $0x70] sm:$0xff] %vm414, %v412
    %430 = vst.msk [vmem:[#allocation2 + $0x78] sm:$0xff] %vm414, %v413
    // Predicated region
    $region30: #{tpu_custom_call.1} parent=1 // pred_check
      _
    $region31: #{tpu_custom_call.1} parent=1 // pred_check_branch
      %432 = sbr.rel (0) target = $region33
    $region32: #{tpu_custom_call.1} parent=1 // pred_region
      %434 = vsyncadd [#allocation3], 2016
      %s435 = sshll.u32 [#allocation2], 4
      %s436 = int_to_ptr.vmem [resolvable:$true] %s435
      %s437 = sshll.u32 %s7, 4
      %s438 = int_to_ptr.hbm [resolvable:$true] %s437
      %443 = dma.vmem_to_hbm [thread:$0]  %s436, 32, %s438, [#allocation3], 32, 32, 2
    $region33: #{tpu_custom_call.1} parent=1 // pred_fallthru
      _
    // Predicated region
    $region34: #{tpu_custom_call.1} parent=1 // pred_check
      _
    $region35: #{tpu_custom_call.1} parent=1 // pred_check_branch
      %445 = sbr.rel (0) target = $region37
    $region36: #{tpu_custom_call.1} parent=1 // pred_region
      %447 = dma.done [#allocation3], 2048
    $region37: #{tpu_custom_call.1} parent=1 // pred_fallthru
      _
    %448 = vsyncpa [#allocation3], 1

</llo_original>
